<compile_context>
chip_gen: v5e
topology: v5e:2x2
jax: 0.10.0
libtpu: 0.0.40
codegen_flags: <defaults>
</compile_context>

<pallas_src>
import jax
import jax.numpy as jnp
from jax.experimental import pallas as pl
from jax.experimental.pallas import tpu as pltpu


def _reparam_kernel(mu_ref, logvar_ref, eps_ref, out_ref):
    # Do the math in f32 (VPU + EUP), cast a single time at the store.
    mu = mu_ref[...].astype(jnp.float32)
    logvar = logvar_ref[...].astype(jnp.float32)
    eps = eps_ref[...].astype(jnp.float32)
    std = jnp.exp(0.5 * logvar)
    out_ref[...] = (mu + eps * std).astype(out_ref.dtype)


def _sublane_multiple(dtype):
    # f32 -> 8, bf16 -> 16, int8/fp8 -> 32 (sub-32-bit dtypes pack along sublanes)
    itemsize = jnp.dtype(dtype).itemsize
    return max(8, 32 // itemsize)


def reparameterize(mu, logvar, eps, *, target_tile_bytes=2 * 1024 * 1024):
    assert mu.shape == logvar.shape == eps.shape
    M, D = mu.shape
    itemsize = jnp.dtype(mu.dtype).itemsize
    sub = _sublane_multiple(mu.dtype)
    row_bytes = max(D * itemsize, 1)

    # Column tiling only if even a minimal sublane-group of rows exceeds the
    # budget and D is lane-aligned; otherwise keep the full (lane-dense) row.
    if D % 128 == 0 and sub * row_bytes > target_tile_bytes:
        tile_cols = max(128, (target_tile_bytes // (sub * itemsize)) // 128 * 128)
        tile_cols = min(tile_cols, D)
    else:
        tile_cols = D
    tile_col_bytes = tile_cols * itemsize

    # Rows per tile: aim for ~target_tile_bytes per block, rounded down to the
    # sublane packing multiple (avoids sub-vreg tiles / masked partial stores).
    tile_rows = max(sub, (target_tile_bytes // tile_col_bytes) // sub * sub)
    if tile_rows >= M:
        tile_rows = M  # block == full dim: no (8,128) divisibility requirement

    grid = (pl.cdiv(M, tile_rows), pl.cdiv(D, tile_cols))
    block = pl.BlockSpec((tile_rows, tile_cols), lambda i, j: (i, j))

    return pl.pallas_call(
        _reparam_kernel,
        out_shape=jax.ShapeDtypeStruct((M, D), mu.dtype),
        grid=grid,
        in_specs=[block, block, block],
        out_specs=block,
        compiler_params=pltpu.CompilerParams(
            dimension_semantics=("parallel", "parallel"),  # tiles independent
            vmem_limit_bytes=32 * 1024 * 1024,
        ),
    )(mu, logvar, eps)


def reparameterization_forward(mu, logvar, key):
    """Forward pass of the Reparameterization module."""
    eps = jax.random.normal(key, mu.shape, dtype=mu.dtype)
    return reparameterize(mu, logvar, eps)


if __name__ == "__main__":
    # Module has no parameters; build deterministic example inputs.
    key = jax.random.PRNGKey(0)
    k_mu, k_lv, k_eps = jax.random.split(key, 3)
    B, D = 16, 256  # small latent batch, lane-aligned latent dim
    mu = jax.random.normal(k_mu, (B, D), dtype=jnp.float32)
    logvar = 0.1 * jax.random.normal(k_lv, (B, D), dtype=jnp.float32)
    eps = jax.random.normal(k_eps, (B, D), dtype=jnp.float32)

    out = reparameterize(mu, logvar, eps)
    out = jax.block_until_ready(out)

    # Sanity: shape/dtype match, values finite, matches the pure-JAX reference.
    assert out.shape == mu.shape and out.dtype == mu.dtype
    assert bool(jnp.all(jnp.isfinite(out)))
    ref = mu + eps * jnp.exp(0.5 * logvar)
    assert bool(jnp.allclose(out, ref, rtol=1e-5, atol=1e-5))
    print("KERNEL_OK")
</pallas_src>

<mosaic_0001>
module attributes {stable_mosaic.version = 11 : i64} {
  func.func @_reparam_kernel(%arg0: i32, %arg1: i32, %arg2: memref<16x256xf32, #tpu.memory_space<vmem>>, %arg3: memref<16x256xf32, #tpu.memory_space<vmem>>, %arg4: memref<16x256xf32, #tpu.memory_space<vmem>>, %arg5: memref<16x256xf32, #tpu.memory_space<vmem>>) attributes {dimension_semantics = [#tpu.dimension_semantics<parallel>, #tpu.dimension_semantics<parallel>], iteration_bounds = array<i64: 1, 1>, scalar_prefetch = 0 : i64, scratch_operands = 0 : i64, tpu.core_type = #tpu.core_type<tc>, window_params = [{transform_indices = @transform_0, window_bounds = array<i64: 16, 256>}, {transform_indices = @transform_1, window_bounds = array<i64: 16, 256>}, {transform_indices = @transform_2, window_bounds = array<i64: 16, 256>}, {transform_indices = @transform_3, window_bounds = array<i64: 16, 256>}]} {
    %c0 = arith.constant 0 : index
    %c0_0 = arith.constant 0 : index
    %0 = vector.load %arg2[%c0, %c0_0] : memref<16x256xf32, #tpu.memory_space<vmem>>, vector<16x256xf32>
    %c0_1 = arith.constant 0 : index
    %c0_2 = arith.constant 0 : index
    %1 = vector.load %arg3[%c0_1, %c0_2] : memref<16x256xf32, #tpu.memory_space<vmem>>, vector<16x256xf32>
    %c0_3 = arith.constant 0 : index
    %c0_4 = arith.constant 0 : index
    %2 = vector.load %arg4[%c0_3, %c0_4] : memref<16x256xf32, #tpu.memory_space<vmem>>, vector<16x256xf32>
    %cst = arith.constant 5.000000e-01 : f32
    %3 = vector.broadcast %cst : f32 to vector<16x256xf32>
    %4 = arith.mulf %3, %1 : vector<16x256xf32>
    %5 = math.exp %4 : vector<16x256xf32>
    %6 = arith.mulf %2, %5 : vector<16x256xf32>
    %7 = arith.addf %0, %6 : vector<16x256xf32>
    %c0_5 = arith.constant 0 : index
    %c0_6 = arith.constant 0 : index
    %8 = vector.load %arg5[%c0_5, %c0_6] : memref<16x256xf32, #tpu.memory_space<vmem>>, vector<16x256xf32>
    tpu.vector_store %arg5[%c0_5, %c0_6], %7 {strides = array<i32>} : memref<16x256xf32, #tpu.memory_space<vmem>>, vector<16x256xf32>,
    return
  }
  func.func @transform_0(%arg0: i32, %arg1: i32) -> (i32, i32) {
    %c0_i32 = arith.constant 0 : i32
    return %arg0, %arg1 : i32, i32
  }
  func.func @transform_1(%arg0: i32, %arg1: i32) -> (i32, i32) {
    %c0_i32 = arith.constant 0 : i32
    return %arg0, %arg1 : i32, i32
  }
  func.func @transform_2(%arg0: i32, %arg1: i32) -> (i32, i32) {
    %c0_i32 = arith.constant 0 : i32
    return %arg0, %arg1 : i32, i32
  }
  func.func @transform_3(%arg0: i32, %arg1: i32) -> (i32, i32) {
    %c0_i32 = arith.constant 0 : i32
    return %arg0, %arg1 : i32, i32
  }
}

</mosaic_0001>

<llo_original>
// kernel: tpu_custom_call.1
$region0: #{tpu_custom_call.1}
  #allocation0 [shape = 'u32[]', space=smem, size = 0x4, offset = 0x4, fixed_abs, tag = 'smem constant byte address 0x4 - core index']
  #allocation1 [shape = 'u32[72,128]{1,0:T(1,128)}', space=vmem, size = 0x9000, scoped, tag = 'internal scratch']
  %s0 = inlined_call_operand.hbm [shape: f32[16,256], index: 0, kind: input, shape index: {}]
  %s1 = inlined_call_operand.hbm [shape: f32[16,256], index: 1, kind: input, shape index: {}]
  %s2 = inlined_call_operand.hbm [shape: f32[16,256], index: 2, kind: input, shape index: {}]
  %s3 = inlined_call_operand.hbm [shape: f32[16,256], index: 3, kind: output, shape index: {}]
  %s4 = sld [smem:[#allocation0]]
  $region34: #{tpu_custom_call.1} parent=0
    _
  %s6 = ssub.s32 1, %s4
  %s7 = scalar_select 0, %s6, %s4
  $region1: #{tpu_custom_call.1} parent=0
    #allocation2 [shape = 'u8[16384]{0}', space=vmem, size = 0x4000, scoped, tag = 'input window, operand 0, single buffered']
    #allocation3 [shape = 's32[1]{0}', space=sflag, size = 0x4, scoped, tag = 'scoped memory for tpu_custom_call.1']
    #allocation4 [shape = 's32[1]{0}', space=sflag, size = 0x4, scoped, tag = 'scoped memory for tpu_custom_call.1']
    #allocation5 [shape = 'u8[16384]{0}', space=vmem, size = 0x4000, scoped, tag = 'input window, operand 1, single buffered']
    #allocation6 [shape = 's32[1]{0}', space=sflag, size = 0x4, scoped, tag = 'scoped memory for tpu_custom_call.1']
    #allocation7 [shape = 'u8[16384]{0}', space=vmem, size = 0x4000, scoped, tag = 'input window, operand 2, single buffered']
    #allocation8 [shape = 'u8[16384]{0}', space=vmem, size = 0x4000, scoped, tag = 'output window, operand 0, single buffered']
    %8 = vsyncpa [#allocation3], 0
    %9 = vsyncpa [#allocation6], 0
    %10 = vsyncpa [#allocation4], 0
    // Predicated region
    $region2: #{tpu_custom_call.1} parent=1 // pred_check
      _
    $region3: #{tpu_custom_call.1} parent=1 // pred_check_branch
      %12 = sbr.rel (0) target = $region5
    $region4: #{tpu_custom_call.1} parent=1 // pred_region
      %14 = vsyncadd [#allocation3], 0
      %s15 = sshll.u32 %s0, 4
      %s16 = int_to_ptr.hbm [resolvable:$true] %s15
      %s17 = sshll.u32 [#allocation2], 4
      %s18 = int_to_ptr.vmem [resolvable:$true] %s17
      %23 = dma.hbm_to_vmem [thread:$0]  %s16, 512, %s18, [#allocation3], 256, 256, 16
    $region5: #{tpu_custom_call.1} parent=1 // pred_fallthru
      _
    // Predicated region
    $region6: #{tpu_custom_call.1} parent=1 // pred_check
      _
    $region7: #{tpu_custom_call.1} parent=1 // pred_check_branch
      %25 = sbr.rel (0) target = $region9
    $region8: #{tpu_custom_call.1} parent=1 // pred_region
      %27 = vsyncadd [#allocation6], 0
      %s28 = sshll.u32 %s1, 4
      %s29 = int_to_ptr.hbm [resolvable:$true] %s28
      %s30 = sshll.u32 [#allocation5], 4
      %s31 = int_to_ptr.vmem [resolvable:$true] %s30
      %36 = dma.hbm_to_vmem [thread:$0]  %s29, 512, %s31, [#allocation6], 256, 256, 16
    $region9: #{tpu_custom_call.1} parent=1 // pred_fallthru
      _
    // Predicated region
    $region10: #{tpu_custom_call.1} parent=1 // pred_check
      _
    $region11: #{tpu_custom_call.1} parent=1 // pred_check_branch
      %38 = sbr.rel (0) target = $region13
    $region12: #{tpu_custom_call.1} parent=1 // pred_region
      %40 = vsyncadd [#allocation6], 0
      %s41 = sshll.u32 %s2, 4
      %s42 = int_to_ptr.hbm [resolvable:$true] %s41
      %s43 = sshll.u32 [#allocation7], 4
      %s44 = int_to_ptr.vmem [resolvable:$true] %s43
      %49 = dma.hbm_to_vmem [thread:$0]  %s42, 512, %s44, [#allocation6], 256, 256, 16
    $region13: #{tpu_custom_call.1} parent=1 // pred_fallthru
      _
    // Predicated region
    $region14: #{tpu_custom_call.1} parent=1 // pred_check
      _
    $region15: #{tpu_custom_call.1} parent=1 // pred_check_branch
      %51 = sbr.rel (0) target = $region17
    $region16: #{tpu_custom_call.1} parent=1 // pred_region
      %53 = dma.done [#allocation3], 512
    $region17: #{tpu_custom_call.1} parent=1 // pred_fallthru
      _
    // Predicated region
    $region18: #{tpu_custom_call.1} parent=1 // pred_check
      _
    $region19: #{tpu_custom_call.1} parent=1 // pred_check_branch
      %55 = sbr.rel (0) target = $region21
    $region20: #{tpu_custom_call.1} parent=1 // pred_region
      %57 = dma.done [#allocation6], 512
    $region21: #{tpu_custom_call.1} parent=1 // pred_fallthru
      _
    // Predicated region
    $region22: #{tpu_custom_call.1} parent=1 // pred_check
      _
    $region23: #{tpu_custom_call.1} parent=1 // pred_check_branch
      %59 = sbr.rel (0) target = $region25
    $region24: #{tpu_custom_call.1} parent=1 // pred_region
      %61 = dma.done [#allocation6], 512
    $region25: #{tpu_custom_call.1} parent=1 // pred_fallthru
      _
    %v62 = vld [vmem:[#allocation2] sm:$0xff]
    %v63 = vld [vmem:[#allocation2 + $0x8] sm:$0xff]
    %v64 = vld [vmem:[#allocation2 + $0x10] sm:$0xff]
    %v65 = vld [vmem:[#allocation2 + $0x18] sm:$0xff]
    %v66 = vld [vmem:[#allocation5] sm:$0xff]
    %v67 = vld [vmem:[#allocation5 + $0x8] sm:$0xff]
    %v68 = vld [vmem:[#allocation5 + $0x10] sm:$0xff]
    %v69 = vld [vmem:[#allocation5 + $0x18] sm:$0xff]
    %v70 = vld [vmem:[#allocation7] sm:$0xff]
    %v71 = vld [vmem:[#allocation7 + $0x8] sm:$0xff]
    %v72 = vld [vmem:[#allocation7 + $0x10] sm:$0xff]
    %v73 = vld [vmem:[#allocation7 + $0x18] sm:$0xff]
    %v74 = vmul.f32 %v66, 0.5
    %v75 = vmul.f32 %v67, 0.5
    %v76 = vmul.f32 %v68, 0.5
    %v77 = vmul.f32 %v69, 0.5
    %v78 = vmul.f32 %v74, 1.442695
    %v79 = vpow.pop %v78
    %v80 = vmul.f32 %v75, 1.442695
    %v81 = vpow.pop %v80
    %v82 = vmul.f32 %v76, 1.442695
    %v83 = vpow.pop %v82
    %v84 = vmul.f32 %v77, 1.442695
    %v85 = vpow.pop %v84
    %v86 = vmul.f32 %v70, %v79
    %v87 = vmul.f32 %v71, %v81
    %v88 = vmul.f32 %v72, %v83
    %v89 = vmul.f32 %v73, %v85
    %v90 = vadd.f32 %v62, %v86
    %v91 = vadd.f32 %v63, %v87
    %v92 = vadd.f32 %v64, %v88
    %v93 = vadd.f32 %v65, %v89
    %94 = vst [vmem:[#allocation8] sm:$0xff] %v90
    %95 = vst [vmem:[#allocation8 + $0x8] sm:$0xff] %v91
    %96 = vst [vmem:[#allocation8 + $0x10] sm:$0xff] %v92
    %97 = vst [vmem:[#allocation8 + $0x18] sm:$0xff] %v93
    // Predicated region
    $region26: #{tpu_custom_call.1} parent=1 // pred_check
      _
    $region27: #{tpu_custom_call.1} parent=1 // pred_check_branch
      %99 = sbr.rel (0) target = $region29
    $region28: #{tpu_custom_call.1} parent=1 // pred_region
      %101 = vsyncadd [#allocation4], 0
      %s102 = sshll.u32 [#allocation8], 4
      %s103 = int_to_ptr.vmem [resolvable:$true] %s102
      %s104 = sshll.u32 %s3, 4
      %s105 = int_to_ptr.hbm [resolvable:$true] %s104
      %110 = dma.vmem_to_hbm [thread:$0]  %s103, 512, %s105, [#allocation4], 256, 256, 16
    $region29: #{tpu_custom_call.1} parent=1 // pred_fallthru
      _
    // Predicated region
    $region30: #{tpu_custom_call.1} parent=1 // pred_check
      _
    $region31: #{tpu_custom_call.1} parent=1 // pred_check_branch
      %112 = sbr.rel (0) target = $region33
    $region32: #{tpu_custom_call.1} parent=1 // pred_region
      %114 = dma.done [#allocation4], 512
    $region33: #{tpu_custom_call.1} parent=1 // pred_fallthru
      _
    %115 = vsyncpa [#allocation3], 1
    %116 = vsyncpa [#allocation6], 1
    %117 = vsyncpa [#allocation4], 1

</llo_original>
